<compile_context>
chip_gen: v6e
topology: v6e:2x2x1
jax: 0.10.0
libtpu: 0.0.40
codegen_flags: <defaults>
</compile_context>

<pallas_src>
import functools

import jax
import jax.numpy as jnp
from jax.experimental import pallas as pl
from jax.experimental.pallas import tpu as pltpu

EPS = 1e-5
NEG_SLOPE = 0.2
LANE = 128


def _leaky_relu(x):
    return jnp.where(x >= 0, x, NEG_SLOPE * x)


def _round_up(x, m):
    return (x + m - 1) // m * m


def _downsample_kernel(patch_ref, w1_ref, w2_ref, o_ref, sum_ref, ssq_ref, *,
                       hw, tile_hw):
    """One (sample, HW-tile) grid step.

    patch_ref: (tile_hw, Cp)         bf16 im2col patch tile
    w1_ref:    (Cp, Cout_pad)        bf16 strided-conv weight, (c, kh, kw)-major rows
    w2_ref:    (Cout_pad, Cout_pad)  bf16 1x1-conv weight
    o_ref:     (hw_pad, Cout_pad)    f32, resident across the HW-tile axis
    sum_ref, ssq_ref: (1, Cout_pad)  f32 running per-channel statistics
    """
    t = pl.program_id(1)

    @pl.when(t == 0)
    def _():
        sum_ref[...] = jnp.zeros_like(sum_ref)
        ssq_ref[...] = jnp.zeros_like(ssq_ref)

    # strided KxK conv as a bf16 matmul with f32 accumulation (MXU)
    y = jnp.dot(patch_ref[...], w1_ref[...], preferred_element_type=jnp.float32)
    y = _leaky_relu(y)
    # 1x1 conv as a bf16 matmul (MXU), f32 accumulation
    y = jnp.dot(y.astype(w2_ref.dtype), w2_ref[...],
                preferred_element_type=jnp.float32)

    # single-pass InstanceNorm statistics (padded rows are exact zeros -> harmless)
    sum_ref[...] += jnp.sum(y, axis=0, keepdims=True)
    ssq_ref[...] += jnp.sum(y * y, axis=0, keepdims=True)

    # stash the pre-norm tile into the resident output block
    row0 = pl.multiple_of(t * tile_hw, tile_hw)
    o_ref[pl.ds(row0, tile_hw), :] = y

    # epilogue on the last HW tile: normalize + LeakyReLU the whole sample in place
    @pl.when(t == pl.num_programs(1) - 1)
    def _():
        inv_hw = 1.0 / hw
        mean = sum_ref[...] * inv_hw
        var = ssq_ref[...] * inv_hw - mean * mean
        var = jnp.maximum(var, 0.0)
        inv_std = jax.lax.rsqrt(var + EPS)
        z = (o_ref[...] - mean) * inv_std
        o_ref[...] = _leaky_relu(z)


def _im2col_nchw(x, k, stride, padding):
    """x: (N, C, H, W) -> patches (N, Hout*Wout, C*K*K), feature order (c, kh, kw)."""
    n, c, h, w = x.shape
    ph, pw = padding
    sh, sw = stride
    kh, kw = k
    xp = jnp.pad(x, ((0, 0), (0, 0), (ph, ph), (pw, pw)))
    h_out = (h + 2 * ph - kh) // sh + 1
    w_out = (w + 2 * pw - kw) // sw + 1
    cols = []
    for i in range(kh):
        for j in range(kw):
            sl = xp[:, :, i:i + (h_out - 1) * sh + 1:sh, j:j + (w_out - 1) * sw + 1:sw]
            cols.append(sl)                               # (N, C, Hout, Wout)
    cols = jnp.stack(cols, axis=2)                        # (N, C, KH*KW, Hout, Wout)
    cols = jnp.transpose(cols, (0, 3, 4, 1, 2))           # (N, Hout, Wout, C, KH*KW)
    return cols.reshape(n, h_out * w_out, c * kh * kw), h_out, w_out


@functools.partial(jax.jit, static_argnames=("kernel_size", "stride", "padding"))
def deform_conv_downsample(x, w_dconv, w_conv, *, kernel_size, stride, padding):
    """x: (N, Cin, H, W) NCHW.  Returns (N, Cout, Hout, Wout) NCHW."""
    k = (kernel_size, kernel_size)
    s = (stride, stride)
    p = (padding, padding)
    n, cin, _, _ = x.shape
    cout = w_dconv.shape[0]

    patches, h_out, w_out = _im2col_nchw(x, k, s, p)      # (N, HW, Cp)
    hw = h_out * w_out
    cp = cin * k[0] * k[1]

    # ---- tiling: HW tiles streamed through the MXU, Cout padded to full lanes ----
    cout_pad = _round_up(cout, LANE)
    # ~8 MiB of bf16 patch rows per in-flight buffer (Pallas double-buffers it)
    budget_rows = max(8, (8 * 1024 * 1024) // max(cp * 2, 1))
    tile_hw = min(2048, budget_rows, _round_up(hw, 8))
    tile_hw = _round_up(tile_hw, 8)
    hw_pad = _round_up(hw, tile_hw)
    n_tiles = hw_pad // tile_hw

    # bf16 operands for the MXU (accumulation stays in f32 inside the kernel)
    patches = jnp.pad(patches, ((0, 0), (0, hw_pad - hw), (0, 0))).astype(jnp.bfloat16)

    # (Cout, Cin, K, K) -> (Cin*K*K, Cout_pad), row order (c, kh, kw)
    w1 = jnp.transpose(w_dconv, (1, 2, 3, 0)).reshape(cp, cout)
    w1 = jnp.pad(w1, ((0, 0), (0, cout_pad - cout))).astype(jnp.bfloat16)
    # (Cout, Cout, 1, 1) -> (Cout_in_pad, Cout_out_pad)
    w2 = jnp.transpose(w_conv[:, :, 0, 0], (1, 0))
    w2 = jnp.pad(w2, ((0, cout_pad - cout), (0, cout_pad - cout))).astype(jnp.bfloat16)

    # explicit VMEM budget derived from the actual tile sizes (capped for v7x)
    vmem_bytes = (
        2 * tile_hw * cp * 2                        # double-buffered patch tiles (bf16)
        + (cp + cout_pad) * cout_pad * 2            # resident weights (bf16)
        + 2 * hw_pad * cout_pad * 4                 # resident per-sample output (f32)
        + 2 * 1024 * 1024                           # scratch + headroom
    )
    vmem_bytes = int(min(max(vmem_bytes, 16 * 1024 * 1024), 48 * 1024 * 1024))

    kernel = functools.partial(_downsample_kernel, hw=hw, tile_hw=tile_hw)

    out = pl.pallas_call(
        kernel,
        out_shape=jax.ShapeDtypeStruct((n, hw_pad, cout_pad), jnp.float32),
        grid_spec=pltpu.PrefetchScalarGridSpec(
            num_scalar_prefetch=0,
            grid=(n, n_tiles),
            in_specs=[
                pl.BlockSpec((pl.Squeezed(), tile_hw, cp), lambda b, t: (b, t, 0)),
                pl.BlockSpec((cp, cout_pad), lambda b, t: (0, 0)),
                pl.BlockSpec((cout_pad, cout_pad), lambda b, t: (0, 0)),
            ],
            out_specs=pl.BlockSpec((pl.Squeezed(), hw_pad, cout_pad),
                                   lambda b, t: (b, 0, 0)),
            scratch_shapes=[
                pltpu.VMEM((1, cout_pad), jnp.float32),   # running sum
                pltpu.VMEM((1, cout_pad), jnp.float32),   # running sum of squares
            ],
        ),
        compiler_params=pltpu.CompilerParams(
            dimension_semantics=("parallel", "arbitrary"),
            vmem_limit_bytes=vmem_bytes,
        ),
    )(patches, w1, w2)

    # (N, HW_pad, Cout_pad) -> (N, Cout, Hout, Wout)
    out = out[:, :hw, :cout].reshape(n, h_out, w_out, cout)
    return jnp.transpose(out, (0, 3, 1, 2)).astype(x.dtype)


if __name__ == "__main__":
    # small shapes: batch=2, in_channels=4, out_channels=8, 16x16 spatial,
    # kernel_size=3, stride=2, padding=1  ->  output (2, 8, 8, 8)
    key = jax.random.PRNGKey(0)
    kx, kw1, kw2 = jax.random.split(key, 3)

    N, CIN, H, W = 2, 4, 16, 16
    COUT, K, STRIDE, PAD = 8, 3, 2, 1

    x = jax.random.normal(kx, (N, CIN, H, W), dtype=jnp.float32)
    w_dconv = 0.1 * jax.random.normal(kw1, (COUT, CIN, K, K), dtype=jnp.float32)
    w_conv = 0.1 * jax.random.normal(kw2, (COUT, COUT, 1, 1), dtype=jnp.float32)

    y = deform_conv_downsample(
        x, w_dconv, w_conv, kernel_size=K, stride=STRIDE, padding=PAD
    )
    jax.block_until_ready(y)
    h_out = (H + 2 * PAD - K) // STRIDE + 1
    w_out = (W + 2 * PAD - K) // STRIDE + 1
    assert y.shape == (N, COUT, h_out, w_out)
    assert jnp.all(jnp.isfinite(y))
    print("KERNEL_OK")
</pallas_src>

<mosaic_0001>
module attributes {stable_mosaic.version = 11 : i64} {
  func.func @_downsample_kernel(%arg0: i32, %arg1: i32, %arg2: memref<1x64x36xbf16, #tpu.memory_space<vmem>>, %arg3: memref<36x128xbf16, #tpu.memory_space<vmem>>, %arg4: memref<128x128xbf16, #tpu.memory_space<vmem>>, %arg5: memref<1x64x128xf32, #tpu.memory_space<vmem>>, %arg6: memref<1x128xf32, #tpu.memory_space<vmem>>, %arg7: memref<1x128xf32, #tpu.memory_space<vmem>>) attributes {dimension_semantics = [#tpu.dimension_semantics<parallel>, #tpu.dimension_semantics<arbitrary>], iteration_bounds = array<i64: 2, 1>, scalar_prefetch = 0 : i64, scratch_operands = 2 : i64, tpu.core_type = #tpu.core_type<tc>, window_params = [{transform_indices = @transform_0, window_bounds = array<i64: 1, 64, 36>}, {pipeline_mode = #tpu.pipeline_mode<synchronous>, transform_indices = @transform_1, window_bounds = array<i64: 36, 128>}, {pipeline_mode = #tpu.pipeline_mode<synchronous>, transform_indices = @transform_2, window_bounds = array<i64: 128, 128>}, {transform_indices = @transform_3, window_bounds = array<i64: 1, 64, 128>}]} {
    %c0_i32 = arith.constant 0 : i32
    %0 = arith.cmpi eq, %arg1, %c0_i32 : i32
    %1 = arith.extui %0 : i1 to i32
    %c0_i32_0 = arith.constant 0 : i32
    %2 = arith.cmpi ne, %1, %c0_i32_0 : i32
    scf.if %2 {
      %cst_24 = arith.constant 0.000000e+00 : f32
      %35 = vector.broadcast %cst_24 : f32 to vector<1x128xf32>
      %c0_25 = arith.constant 0 : index
      %c0_26 = arith.constant 0 : index
      %36 = vector.load %arg6[%c0_25, %c0_26] : memref<1x128xf32, #tpu.memory_space<vmem>>, vector<1x128xf32>
      tpu.vector_store %arg6[%c0_25, %c0_26], %35 {strides = array<i32>} : memref<1x128xf32, #tpu.memory_space<vmem>>, vector<1x128xf32>,
      %cst_27 = arith.constant 0.000000e+00 : f32
      %37 = vector.broadcast %cst_27 : f32 to vector<1x128xf32>
      %c0_28 = arith.constant 0 : index
      %c0_29 = arith.constant 0 : index
      %38 = vector.load %arg7[%c0_28, %c0_29] : memref<1x128xf32, #tpu.memory_space<vmem>>, vector<1x128xf32>
      tpu.vector_store %arg7[%c0_28, %c0_29], %37 {strides = array<i32>} : memref<1x128xf32, #tpu.memory_space<vmem>>, vector<1x128xf32>,
    } else {
    }
    %c0 = arith.constant 0 : index
    %c0_1 = arith.constant 0 : index
    %c0_2 = arith.constant 0 : index
    %3 = vector.load %arg2[%c0, %c0_1, %c0_2] : memref<1x64x36xbf16, #tpu.memory_space<vmem>>, vector<1x64x36xbf16>
    %4 = vector.shape_cast %3 : vector<1x64x36xbf16> to vector<64x36xbf16>
    %c0_3 = arith.constant 0 : index
    %c0_4 = arith.constant 0 : index
    %5 = vector.load %arg3[%c0_3, %c0_4] : memref<36x128xbf16, #tpu.memory_space<vmem>>, vector<36x128xbf16>
    %cst = arith.constant dense<0.000000e+00> : vector<64x128xf32>
    %6 = tpu.matmul %4, %5, %cst {dimension_numbers = #tpu.dot_dimension_numbers<[1], [0], [0], [1], [0, 0, 1, 1], [], []>} : vector<64x36xbf16>, vector<36x128xbf16>, vector<64x128xf32> -> vector<64x128xf32>
    %cst_5 = arith.constant 0.000000e+00 : f32
    %7 = vector.broadcast %cst_5 : f32 to vector<64x128xf32>
    %8 = arith.cmpf oge, %6, %7 : vector<64x128xf32>
    %cst_6 = arith.constant 2.000000e-01 : f32
    %9 = vector.broadcast %cst_6 : f32 to vector<64x128xf32>
    %10 = arith.mulf %9, %6 : vector<64x128xf32>
    %11 = arith.select %8, %6, %10 : vector<64x128xi1>, vector<64x128xf32>
    %12 = arith.truncf %11 : vector<64x128xf32> to vector<64x128xbf16>
    %c0_7 = arith.constant 0 : index
    %c0_8 = arith.constant 0 : index
    %13 = vector.load %arg4[%c0_7, %c0_8] : memref<128x128xbf16, #tpu.memory_space<vmem>>, vector<128x128xbf16>
    %cst_9 = arith.constant dense<0.000000e+00> : vector<64x128xf32>
    %14 = tpu.matmul %12, %13, %cst_9 {dimension_numbers = #tpu.dot_dimension_numbers<[1], [0], [0], [1], [0, 0, 1, 1], [], []>} : vector<64x128xbf16>, vector<128x128xbf16>, vector<64x128xf32> -> vector<64x128xf32>
    %c0_10 = arith.constant 0 : index
    %c0_11 = arith.constant 0 : index
    %15 = vector.load %arg6[%c0_10, %c0_11] : memref<1x128xf32, #tpu.memory_space<vmem>>, vector<1x128xf32>
    %cst_12 = arith.constant dense<0.000000e+00> : vector<128xf32>
    %16 = vector.multi_reduction <add>, %14, %cst_12 [0] : vector<64x128xf32> to vector<128xf32>
    %17 = vector.shape_cast %16 : vector<128xf32> to vector<1x128xf32>
    %18 = arith.addf %15, %17 : vector<1x128xf32>
    %c0_13 = arith.constant 0 : index
    %c0_14 = arith.constant 0 : index
    %19 = vector.load %arg6[%c0_13, %c0_14] : memref<1x128xf32, #tpu.memory_space<vmem>>, vector<1x128xf32>
    tpu.vector_store %arg6[%c0_13, %c0_14], %18 {strides = array<i32>} : memref<1x128xf32, #tpu.memory_space<vmem>>, vector<1x128xf32>,
    %c0_15 = arith.constant 0 : index
    %c0_16 = arith.constant 0 : index
    %20 = vector.load %arg7[%c0_15, %c0_16] : memref<1x128xf32, #tpu.memory_space<vmem>>, vector<1x128xf32>
    %21 = arith.mulf %14, %14 : vector<64x128xf32>
    %cst_17 = arith.constant dense<0.000000e+00> : vector<128xf32>
    %22 = vector.multi_reduction <add>, %21, %cst_17 [0] : vector<64x128xf32> to vector<128xf32>
    %23 = vector.shape_cast %22 : vector<128xf32> to vector<1x128xf32>
    %24 = arith.addf %20, %23 : vector<1x128xf32>
    %c0_18 = arith.constant 0 : index
    %c0_19 = arith.constant 0 : index
    %25 = vector.load %arg7[%c0_18, %c0_19] : memref<1x128xf32, #tpu.memory_space<vmem>>, vector<1x128xf32>
    tpu.vector_store %arg7[%c0_18, %c0_19], %24 {strides = array<i32>} : memref<1x128xf32, #tpu.memory_space<vmem>>, vector<1x128xf32>,
    %c64_i32 = arith.constant 64 : i32
    %26 = arith.muli %arg1, %c64_i32 : i32
    %27 = tpu.assume_multiple %26, 64 : i32
    %c0_20 = arith.constant 0 : index
    %28 = arith.index_cast %27 : i32 to index
    %c0_21 = arith.constant 0 : index
    %29 = vector.load %arg5[%c0_20, %28, %c0_21] : memref<1x64x128xf32, #tpu.memory_space<vmem>>, vector<1x64x128xf32>
    %30 = vector.shape_cast %29 : vector<1x64x128xf32> to vector<64x128xf32>
    %31 = vector.shape_cast %14 : vector<64x128xf32> to vector<1x64x128xf32>
    tpu.vector_store %arg5[%c0_20, %28, %c0_21], %31 {strides = array<i32>} : memref<1x64x128xf32, #tpu.memory_space<vmem>>, vector<1x64x128xf32>,
    %c0_i32_22 = arith.constant 0 : i32
    %32 = arith.cmpi eq, %arg1, %c0_i32_22 : i32
    %33 = arith.extui %32 : i1 to i32
    %c0_i32_23 = arith.constant 0 : i32
    %34 = arith.cmpi ne, %33, %c0_i32_23 : i32
    scf.if %34 {
      %c0_24 = arith.constant 0 : index
      %c0_25 = arith.constant 0 : index
      %35 = vector.load %arg6[%c0_24, %c0_25] : memref<1x128xf32, #tpu.memory_space<vmem>>, vector<1x128xf32>
      %cst_26 = arith.constant 1.562500e-02 : f32
      %36 = vector.broadcast %cst_26 : f32 to vector<1x128xf32>
      %37 = arith.mulf %35, %36 : vector<1x128xf32>
      %c0_27 = arith.constant 0 : index
      %c0_28 = arith.constant 0 : index
      %38 = vector.load %arg7[%c0_27, %c0_28] : memref<1x128xf32, #tpu.memory_space<vmem>>, vector<1x128xf32>
      %cst_29 = arith.constant 1.562500e-02 : f32
      %39 = vector.broadcast %cst_29 : f32 to vector<1x128xf32>
      %40 = arith.mulf %38, %39 : vector<1x128xf32>
      %41 = arith.mulf %37, %37 : vector<1x128xf32>
      %42 = arith.subf %40, %41 : vector<1x128xf32>
      %cst_30 = arith.constant 0.000000e+00 : f32
      %43 = vector.broadcast %cst_30 : f32 to vector<1x128xf32>
      %44 = arith.maximumf %42, %43 : vector<1x128xf32>
      %cst_31 = arith.constant 9.99999974E-6 : f32
      %45 = vector.broadcast %cst_31 : f32 to vector<1x128xf32>
      %46 = arith.addf %44, %45 : vector<1x128xf32>
      %47 = math.rsqrt %46 : vector<1x128xf32>
      %c0_32 = arith.constant 0 : index
      %c0_33 = arith.constant 0 : index
      %c0_34 = arith.constant 0 : index
      %48 = vector.load %arg5[%c0_32, %c0_33, %c0_34] : memref<1x64x128xf32, #tpu.memory_space<vmem>>, vector<1x64x128xf32>
      %49 = vector.shape_cast %48 : vector<1x64x128xf32> to vector<64x128xf32>
      %50 = vector.broadcast %37 : vector<1x128xf32> to vector<64x128xf32>
      %51 = arith.subf %49, %50 : vector<64x128xf32>
      %52 = vector.broadcast %47 : vector<1x128xf32> to vector<64x128xf32>
      %53 = arith.mulf %51, %52 : vector<64x128xf32>
      %cst_35 = arith.constant 0.000000e+00 : f32
      %54 = vector.broadcast %cst_35 : f32 to vector<64x128xf32>
      %55 = arith.cmpf oge, %53, %54 : vector<64x128xf32>
      %cst_36 = arith.constant 2.000000e-01 : f32
      %56 = vector.broadcast %cst_36 : f32 to vector<64x128xf32>
      %57 = arith.mulf %56, %53 : vector<64x128xf32>
      %58 = arith.select %55, %53, %57 : vector<64x128xi1>, vector<64x128xf32>
      %c0_37 = arith.constant 0 : index
      %c0_38 = arith.constant 0 : index
      %c0_39 = arith.constant 0 : index
      %59 = vector.load %arg5[%c0_37, %c0_38, %c0_39] : memref<1x64x128xf32, #tpu.memory_space<vmem>>, vector<1x64x128xf32>
      %60 = vector.shape_cast %59 : vector<1x64x128xf32> to vector<64x128xf32>
      %61 = vector.shape_cast %58 : vector<64x128xf32> to vector<1x64x128xf32>
      tpu.vector_store %arg5[%c0_37, %c0_38, %c0_39], %61 {strides = array<i32>} : memref<1x64x128xf32, #tpu.memory_space<vmem>>, vector<1x64x128xf32>,
    } else {
    }
    return
  }
  func.func @transform_0(%arg0: i32, %arg1: i32) -> (i32, i32, i32) {
    %c0_i32 = arith.constant 0 : i32
    %c0_i32_0 = arith.constant 0 : i32
    return %arg0, %arg1, %c0_i32 : i32, i32, i32
  }
  func.func @transform_1(%arg0: i32, %arg1: i32) -> (i32, i32) {
    %c0_i32 = arith.constant 0 : i32
    %c0_i32_0 = arith.constant 0 : i32
    %c0_i32_1 = arith.constant 0 : i32
    return %c0_i32, %c0_i32_0 : i32, i32
  }
  func.func @transform_2(%arg0: i32, %arg1: i32) -> (i32, i32) {
    %c0_i32 = arith.constant 0 : i32
    %c0_i32_0 = arith.constant 0 : i32
    %c0_i32_1 = arith.constant 0 : i32
    return %c0_i32, %c0_i32_0 : i32, i32
  }
  func.func @transform_3(%arg0: i32, %arg1: i32) -> (i32, i32, i32) {
    %c0_i32 = arith.constant 0 : i32
    %c0_i32_0 = arith.constant 0 : i32
    %c0_i32_1 = arith.constant 0 : i32
    return %arg0, %c0_i32, %c0_i32_0 : i32, i32, i32
  }
}

</mosaic_0001>

<llo_original>
// kernel: deform_conv_downsample.1
$region0: #{deform_conv_downsample.1}
  #allocation0 [shape = 'u32[]', space=smem, size = 0x4, offset = 0x4, fixed_abs, tag = 'smem constant byte address 0x4 - core index']
  #allocation1 [shape = 'u32[144,128]{1,0:T(1,128)}', space=vmem, size = 0x12000, scoped, tag = 'internal scratch']
  #allocation2 [shape = 'f32[1,128]{1,0:T(1,128)}', space=vmem, size = 0x200, scoped, tag = 'scratch operand']
  #allocation3 [shape = 'f32[1,128]{1,0:T(1,128)}', space=vmem, size = 0x200, scoped, tag = 'scratch operand']
  %s0 = inlined_call_operand.vmem [shape: bf16[2,64,36], index: 0, kind: input, shape index: {}]
  %s1 = inlined_call_operand.vmem [shape: bf16[36,128], index: 1, kind: input, shape index: {}]
  %s2 = inlined_call_operand.vmem [shape: bf16[128,128], index: 2, kind: input, shape index: {}]
  %s3 = inlined_call_operand.vmem [shape: f32[2,64,128], index: 3, kind: output, shape index: {}]
  %s4 = sld [smem:[#allocation0]]
  $region53: #{deform_conv_downsample.1} parent=0
    _
  %s6 = ssub.s32 1, %s4
  %s7 = scalar_select 0, %s6, %s4
  loop: start=0, step=1, limit=4
  $region2: #{deform_conv_downsample.1} parent=0 // loop_pre_header
    _
  $region3: #{deform_conv_downsample.1} parent=0 // loop_header
    %s9 = sphi 0, %s13
    %p10 = scmp.ge.s32.totalorder %s9, 4
    %s16 = sphi 0, %s28
    %s17 = sphi 0, %s24
    %s18 = sphi 0, %s16
    %s19 = sphi 0, %s17
    %s20 = sphi 0, %s18
    %s21 = sphi 0, %s19
    %s33 = sphi 0, %s35
    %s36 = sphi 0, %s33
    %s37 = sphi 0, %s36
    %s53 = sphi 0, %s37
    %s57 = sphi 0, %s57
    %s59 = sphi 0, %s57
    %s60 = sphi 0, %s59
    %s74 = sphi 0, %s60
    %s78 = sphi 0, %s78
    %s80 = sphi 0, %s78
    %s81 = sphi 0, %s80
    %s95 = sphi 0, %s81
    %s101 = sphi 0, %s103
    %s104 = sphi 0, %s101
    %s105 = sphi 0, %s104
    %s121 = sphi 0, %s105
  $region4: #{deform_conv_downsample.1} parent=0 // loop_header_branch
    %12 = sbr.rel (%p10) target = $region8
  $region5: #{deform_conv_downsample.1} parent=0 // loop_body
    %s14 = ssub.s32 %s9, 1
    %s15 = ssub.s32 %s9, 2
    %s22 = sadd.s32 1, %s17
    %p23 = scmp.ge.s32.totalorder %s22, 1
    %s24 = scalar_select %p23, 0, %s22
    %s25 = sadd.s32 1, %s16
    %s26 = scalar_select %p23, %s25, %s16
    %p27 = scmp.ge.s32.totalorder %s26, 2
    %s28 = scalar_select %p27, 0, %s26
    %s29 = ssub.s32 %s16, %s28
    %s30 = ssub.s32 %s17, %s24
    %s31 = sor.u32 %s29, %s30
    %p32 = scmp.eq.s32.totalorder %s31, 0
    %s34 = sadd.s32 %s33, 1
    %s35 = scalar_select %p32, %s33, %s34
    %p38 = pneg %p32
    %p39 = scmp.eq.s32.totalorder %s9, 1
    %p40 = por %p38, %p39
    %p41 = scmp.ne.s32.totalorder %s33, %s36
    %p42 = scmp.eq.s32.totalorder %s9, 0
    %p43 = por %p41, %p42
    %p44 = scmp.ne.s32.totalorder %s33, %s36
    %p45 = scmp.eq.s32.totalorder %s14, 1
    %p46 = por %p44, %p45
    %p47 = scmp.ne.s32.totalorder %s36, %s37
    %p48 = scmp.eq.s32.totalorder %s14, 0
    %p49 = por %p47, %p48
    %p50 = scmp.ne.s32.totalorder %s36, %s37
    %p51 = scmp.eq.s32.totalorder %s15, 1
    %p52 = por %p50, %p51
    %p54 = scmp.ne.s32.totalorder %s37, %s53
    %p55 = scmp.eq.s32.totalorder %s15, 0
    %p56 = por %p54, %p55
    %s58 = sadd.s32 %s57, 1
    %p61 = scmp.eq.s32.totalorder %s9, 1
    %p62 = scmp.ne.s32.totalorder %s57, %s59
    %p63 = scmp.eq.s32.totalorder %s9, 0
    %p64 = por %p62, %p63
    %p65 = scmp.ne.s32.totalorder %s57, %s59
    %p66 = scmp.eq.s32.totalorder %s14, 1
    %p67 = por %p65, %p66
    %p68 = scmp.ne.s32.totalorder %s59, %s60
    %p69 = scmp.eq.s32.totalorder %s14, 0
    %p70 = por %p68, %p69
    %p71 = scmp.ne.s32.totalorder %s59, %s60
    %p72 = scmp.eq.s32.totalorder %s15, 1
    %p73 = por %p71, %p72
    %p75 = scmp.ne.s32.totalorder %s60, %s74
    %p76 = scmp.eq.s32.totalorder %s15, 0
    %p77 = por %p75, %p76
    %s79 = sadd.s32 %s78, 1
    %p82 = scmp.eq.s32.totalorder %s9, 1
    %p83 = scmp.ne.s32.totalorder %s78, %s80
    %p84 = scmp.eq.s32.totalorder %s9, 0
    %p85 = por %p83, %p84
    %p86 = scmp.ne.s32.totalorder %s78, %s80
    %p87 = scmp.eq.s32.totalorder %s14, 1
    %p88 = por %p86, %p87
    %p89 = scmp.ne.s32.totalorder %s80, %s81
    %p90 = scmp.eq.s32.totalorder %s14, 0
    %p91 = por %p89, %p90
    %p92 = scmp.ne.s32.totalorder %s80, %s81
    %p93 = scmp.eq.s32.totalorder %s15, 1
    %p94 = por %p92, %p93
    %p96 = scmp.ne.s32.totalorder %s81, %s95
    %p97 = scmp.eq.s32.totalorder %s15, 0
    %p98 = por %p96, %p97
    %s99 = ssub.s32 %s16, %s28
    %p100 = scmp.eq.s32.totalorder %s99, 0
    %s102 = sadd.s32 %s101, 1
    %s103 = scalar_select %p100, %s101, %s102
    %p106 = pneg %p100
    %p107 = scmp.eq.s32.totalorder %s9, 1
    %p108 = por %p106, %p107
    %p109 = scmp.ne.s32.totalorder %s101, %s104
    %p110 = scmp.eq.s32.totalorder %s9, 0
    %p111 = por %p109, %p110
    %p112 = scmp.ne.s32.totalorder %s101, %s104
    %p113 = scmp.eq.s32.totalorder %s14, 1
    %p114 = por %p112, %p113
    %p115 = scmp.ne.s32.totalorder %s104, %s105
    %p116 = scmp.eq.s32.totalorder %s14, 0
    %p117 = por %p115, %p116
    %p118 = scmp.ne.s32.totalorder %s104, %s105
    %p119 = scmp.eq.s32.totalorder %s15, 1
    %p120 = por %p118, %p119
    %p122 = scmp.ne.s32.totalorder %s105, %s121
    %p123 = scmp.eq.s32.totalorder %s15, 0
    %p124 = por %p122, %p123
    %p125 = scmp.le.s32.totalorder 1, %s9
    %p126 = scmp.lt.s32.totalorder %s9, 3
    %p127 = pnand %p125, %p126
    %p128 = pneg %p127
    // Predicated region
    $region9: #{deform_conv_downsample.1} parent=5 // pred_check
      _
    $region10: #{deform_conv_downsample.1} parent=5 // pred_check_branch
      %130 = sbr.rel (%p127) target = $region12
    $region11: #{deform_conv_downsample.1} parent=5 // pred_region
      %s131 = ssub.s32 %s9, 1
      // Predicated region
      $region13: #{deform_conv_downsample.1} parent=11 // pred_check
        %p132 = pneg %p70
      $region14: #{deform_conv_downsample.1} parent=11 // pred_check_branch
        %134 = sbr.rel (%p132) target = $region16
      $region15: #{deform_conv_downsample.1} parent=11 // pred_region
        _
      $region16: #{deform_conv_downsample.1} parent=11 // pred_fallthru
        _
      // Predicated region
      $region17: #{deform_conv_downsample.1} parent=11 // pred_check
        %p135 = pneg %p91
      $region18: #{deform_conv_downsample.1} parent=11 // pred_check_branch
        %137 = sbr.rel (%p135) target = $region20
      $region19: #{deform_conv_downsample.1} parent=11 // pred_region
        _
      $region20: #{deform_conv_downsample.1} parent=11 // pred_fallthru
        _
    $region12: #{deform_conv_downsample.1} parent=5 // pred_fallthru
      _
    %p138 = scmp.lt.s32.totalorder %s9, 2
    // Predicated region
    $region21: #{deform_conv_downsample.1} parent=5 // pred_check
      %p139 = pneg %p138
    $region22: #{deform_conv_downsample.1} parent=5 // pred_check_branch
      %141 = sbr.rel (%p139) target = $region24
    $region23: #{deform_conv_downsample.1} parent=5 // pred_region
      // Predicated region
      $region25: #{deform_conv_downsample.1} parent=23 // pred_check
        %p142 = pneg %p43
      $region26: #{deform_conv_downsample.1} parent=23 // pred_check_branch
        %144 = sbr.rel (%p142) target = $region28
      $region27: #{deform_conv_downsample.1} parent=23 // pred_region
        %s145 = smul.u32 8, %s17
        %p146 = scmp.lt.s32.totalorder %s16, 1
        %s147 = scalar_select %p146, %s16, 1
        %p148 = scmp.lt.s32.totalorder %s145, 7
        %s149 = scalar_select %p148, %s145, 7
        %s150 = smul.addr %s147, 8
        %s151 = sadd.s32 %s149, %s150
        %s152 = smul.addr %s151, 4
        %s153 = scalar_lea.vmem %s0, %s152
        %s154 = smul.u32 8, %s17
      $region28: #{deform_conv_downsample.1} parent=23 // pred_fallthru
        _
    $region24: #{deform_conv_downsample.1} parent=5 // pred_fallthru
      _
    %p155 = scmp.le.s32.totalorder 1, %s9
    %p156 = scmp.lt.s32.totalorder %s9, 3
    %p157 = pnand %p155, %p156
    %p158 = pneg %p157
    // Predicated region
    $region29: #{deform_conv_downsample.1} parent=5 // pred_check
      _
    $region30: #{deform_conv_downsample.1} parent=5 // pred_check_branch
      %160 = sbr.rel (%p157) target = $region32
    $region31: #{deform_conv_downsample.1} parent=5 // pred_region
      %s161 = ssub.s32 %s9, 1
      %s162 = smul.u32 8, %s19
      %p163 = scmp.lt.s32.totalorder %s18, 1
      %s164 = scalar_select %p163, %s18, 1
      %p165 = scmp.lt.s32.totalorder %s162, 7
      %s166 = scalar_select %p165, %s162, 7
      %s167 = smul.addr %s164, 8
      %s168 = sadd.s32 %s166, %s167
      %s169 = smul.addr %s168, 4
      %s170 = scalar_lea.vmem %s0, %s169
      %p171 = pneg %p49
      %p172 = pneg %p46
      %p173 = pneg %p70
      %p174 = pneg %p67
      %p175 = pneg %p91
      %p176 = pneg %p88
      %p177 = pneg %p117
      %p178 = pneg %p114
      %p179 = scmp.lt.s32.totalorder %s18, 1
      %s180 = scalar_select %p179, %s18, 1
      %s181 = smul.addr %s180, 8
      %s182 = smul.addr %s181, 8
      %s183 = scalar_lea.vmem %s3, %s182
      %s184 = smul.u32 8, %s19
      %p185 = scmp.lt.s32.totalorder %s18, 1
      %s186 = scalar_select %p185, %s18, 1
      %p187 = scmp.lt.s32.totalorder %s184, 7
      %s188 = scalar_select %p187, %s184, 7
      %s189 = smul.addr %s186, 8
      %s190 = sadd.s32 %s188, %s189
      %s191 = smul.addr %s190, 4
      %s192 = scalar_lea.vmem %s0, %s191
      %s193 = smul.u32 8, %s19
      %p194 = scmp.lt.s32.totalorder %s18, 1
      %s195 = scalar_select %p194, %s18, 1
      %s196 = smul.addr %s195, 8
      %s197 = smul.addr %s196, 8
      %s198 = scalar_lea.vmem %s3, %s197
      %p200 = scmp.eq.s32.totalorder %s19, 0
      // Predicated region
      $region33: #{deform_conv_downsample.1} parent=31 // pred_check
        %p201 = pneg %p200
      $region34: #{deform_conv_downsample.1} parent=31 // pred_check_branch
        %203 = sbr.rel (%p201) target = $region36
      $region35: #{deform_conv_downsample.1} parent=31 // pred_region
        %204 = vst [vmem:[#allocation2] sm:$0x1] 0.0
        %205 = vst [vmem:[#allocation3] sm:$0x1] 0.0
      $region36: #{deform_conv_downsample.1} parent=31 // pred_fallthru
        _
      %v206 = vld [vmem:[%s192] sm:$0xf]
      %v207 = vld [vmem:[%s192 + $0x4] sm:$0xf]
      %v208 = vld [vmem:[%s192 + $0x8] sm:$0xf]
      %v209 = vld [vmem:[%s192 + $0xc] sm:$0xf]
      %v210 = vld [vmem:[%s192 + $0x10] sm:$0xf]
      %v211 = vld [vmem:[%s192 + $0x14] sm:$0xf]
      %v212 = vld [vmem:[%s192 + $0x18] sm:$0xf]
      %v213 = vld [vmem:[%s192 + $0x1c] sm:$0xf]
      %v214 = vld [vmem:[%s1] sm:$0xf]
      %v215 = vld [vmem:[%s1 + $0x4] sm:$0xf]
      %v216 = vld [vmem:[%s1 + $0x8] sm:$0xf]
      %v217 = vld [vmem:[%s1 + $0xc] sm:$0xf]
      %v218 = vld [vmem:[%s1 + $0x10] sm:$0x3]
      %v227 = vunpack.c.l.b16 %v206
      %v228 = vunpack.c.l.b16 %v207
      %v229 = vunpack.c.l.b16 %v208
      %v230 = vunpack.c.l.b16 %v209
      %v231 = vunpack.c.l.b16 %v210
      %v232 = vunpack.c.l.b16 %v211
      %v233 = vunpack.c.l.b16 %v212
      %v234 = vunpack.c.l.b16 %v213
      %v235 = vpack.c.b16 %v228, %v227
      %v236 = vpack.c.b16 %v230, %v229
      %v237 = vpack.c.b16 %v232, %v231
      %v238 = vpack.c.b16 %v234, %v233
      %v244 = vunpack.c.l.b16 %v214
      %v245 = vunpack.c.l.b16 %v215
      %v246 = vunpack.c.l.b16 %v216
      %v247 = vunpack.c.l.b16 %v217
      %v248 = vunpack.c.l.b16 %v218
      %v249 = vpack.c.b16 %v245, %v244
      %v250 = vpack.c.b16 %v247, %v246
      %v251 = vpack.c.b16 %v248, %v248
      %vm254 = vcmask 293888
      %v256 = vsel %vm254, %v235, 0
      %v259 = vsel %vm254, %v236, 0
      %v262 = vsel %vm254, %v237, 0
      %v265 = vsel %vm254, %v238, 0
      %vm267 = vcmask 1041408
      %v269 = vsel %vm267, %v251, 0
      %271 = vmatprep.subr.bf16.mxu0 0
      %272 = vmatpush1.bf16.msra.mxu0 0
      %273 = vmatprep.subr.bf16.mxu0 0
      %274 = vmatpush1.bf16.msra.mxu0 0
      %275 = vmatprep.subr.bf16.mxu0 0
      %276 = vmatpush1.bf16.msra.mxu0 0
      %277 = vmatprep.subr.bf16.mxu0 0
      %278 = vmatpush1.bf16.msra.mxu0 0
      %279 = vmatprep.subr.bf16.mxu0 0
      %280 = vmatpush1.bf16.msra.mxu0 0
      %281 = vmatprep.subr.bf16.mxu0 0
      %282 = vmatpush1.bf16.msra.mxu0 %v269
      %283 = vmatprep.subr.bf16.mxu0 0
      %284 = vmatpush1.bf16.msra.mxu0 %v250
      %285 = vmatprep.subr.bf16.mxu0 0
      %286 = vmatpush1.bf16.msra.mxu0 %v249
      %287 = vmatprep.subr.bf16.mxu0 0
      %288 = vmatpush2.bf16.msra.mxu0 0
      %289 = vmatprep.subr.bf16.mxu0 0
      %290 = vmatpush2.bf16.msra.mxu0 0
      %291 = vmatprep.subr.bf16.mxu0 0
      %292 = vmatpush2.bf16.msra.mxu0 0
      %293 = vmatprep.subr.bf16.mxu0 0
      %294 = vmatpush2.bf16.msra.mxu0 0
      %295 = vmatprep.subr.bf16.mxu0 0
      %296 = vmatpush2.bf16.msra.mxu0 0
      %297 = vmatprep.subr.bf16.mxu0 0
      %298 = vmatpush2.bf16.msra.mxu0 0
      %299 = vmatprep.subr.bf16.mxu0 0
      %300 = vmatpush2.bf16.msra.mxu0 0
      %301 = vmatprep.subr.bf16.mxu0 0
      %302 = vmatpush2.bf16.msra.mxu0 0
      %303 = vmatprep.mubr.bf16.mxu0 0
      %304 = vmatmul.mubr.bf16.gmra.mxu0 %v256
      %v305 = vpop.f32.mrf.mxu0
      %v306 = vadd.f32 0.0, %v305
      %v307 = vpop.f32.mrf.mxu0
      %v308 = vpop.f32.mrf.mxu0
      %v309 = vadd.f32 0.0, %v308
      %v310 = vpop.f32.mrf.mxu0
      %311 = vmatprep.mubr.bf16.mxu0 0
      %312 = vmatmul.mubr.bf16.gmra.mxu0 %v259
      %v313 = vpop.f32.mrf.mxu0
      %v314 = vadd.f32 0.0, %v313
      %v315 = vpop.f32.mrf.mxu0
      %v316 = vpop.f32.mrf.mxu0
      %v317 = vadd.f32 0.0, %v316
      %v318 = vpop.f32.mrf.mxu0
      %319 = vmatprep.mubr.bf16.mxu0 0
      %320 = vmatmul.mubr.bf16.gmra.mxu0 %v262
      %v321 = vpop.f32.mrf.mxu0
      %v322 = vadd.f32 0.0, %v321
      %v323 = vpop.f32.mrf.mxu0
      %v324 = vpop.f32.mrf.mxu0
      %v325 = vadd.f32 0.0, %v324
      %v326 = vpop.f32.mrf.mxu0
      %327 = vmatprep.mubr.bf16.mxu0 0
      %328 = vmatmul.mubr.bf16.gmra.mxu0 %v265
      %v329 = vpop.f32.mrf.mxu0
      %v330 = vadd.f32 0.0, %v329
      %v331 = vpop.f32.mrf.mxu0
      %v332 = vpop.f32.mrf.mxu0
      %v333 = vadd.f32 0.0, %v332
      %v334 = vpop.f32.mrf.mxu0
      %335 = vdwg.mxu0
      %vm336 = vcmp.ge.f32.partialorder %v306, 0.0
      %vm337 = vcmp.ge.f32.partialorder %v309, 0.0
      %vm338 = vcmp.ge.f32.partialorder %v314, 0.0
      %vm339 = vcmp.ge.f32.partialorder %v317, 0.0
      %vm340 = vcmp.ge.f32.partialorder %v322, 0.0
      %vm341 = vcmp.ge.f32.partialorder %v325, 0.0
      %vm342 = vcmp.ge.f32.partialorder %v330, 0.0
      %vm343 = vcmp.ge.f32.partialorder %v333, 0.0
      %v344 = vmul.f32 %v306, 0.2
      %v345 = vmul.f32 %v309, 0.2
      %v346 = vmul.f32 %v314, 0.2
      %v347 = vmul.f32 %v317, 0.2
      %v348 = vmul.f32 %v322, 0.2
      %v349 = vmul.f32 %v325, 0.2
      %v350 = vmul.f32 %v330, 0.2
      %v351 = vmul.f32 %v333, 0.2
      %v352 = vsel %vm336, %v306, %v344
      %v353 = vsel %vm337, %v309, %v345
      %v354 = vsel %vm338, %v314, %v346
      %v355 = vsel %vm339, %v317, %v347
      %v356 = vsel %vm340, %v322, %v348
      %v357 = vsel %vm341, %v325, %v349
      %v358 = vsel %vm342, %v330, %v350
      %v359 = vsel %vm343, %v333, %v351
      %v360 = vpack.c.bf16 %v353, %v352
      %v361 = vpack.c.bf16 %v355, %v354
      %v362 = vpack.c.bf16 %v357, %v356
      %v363 = vpack.c.bf16 %v359, %v358
      %v364 = vld [vmem:[%s2] sm:$0xf]
      %v365 = vld [vmem:[%s2 + $0x4] sm:$0xf]
      %v366 = vld [vmem:[%s2 + $0x8] sm:$0xf]
      %v367 = vld [vmem:[%s2 + $0xc] sm:$0xf]
      %v368 = vld [vmem:[%s2 + $0x10] sm:$0xf]
      %v369 = vld [vmem:[%s2 + $0x14] sm:$0xf]
      %v370 = vld [vmem:[%s2 + $0x18] sm:$0xf]
      %v371 = vld [vmem:[%s2 + $0x1c] sm:$0xf]
      %v372 = vld [vmem:[%s2 + $0x20] sm:$0xf]
      %v373 = vld [vmem:[%s2 + $0x24] sm:$0xf]
      %v374 = vld [vmem:[%s2 + $0x28] sm:$0xf]
      %v375 = vld [vmem:[%s2 + $0x2c] sm:$0xf]
      %v376 = vld [vmem:[%s2 + $0x30] sm:$0xf]
      %v377 = vld [vmem:[%s2 + $0x34] sm:$0xf]
      %v378 = vld [vmem:[%s2 + $0x38] sm:$0xf]
      %v379 = vld [vmem:[%s2 + $0x3c] sm:$0xf]
      %v396 = vunpack.c.l.b16 %v364
      %v397 = vunpack.c.l.b16 %v365
      %v398 = vunpack.c.l.b16 %v366
      %v399 = vunpack.c.l.b16 %v367
      %v400 = vunpack.c.l.b16 %v368
      %v401 = vunpack.c.l.b16 %v369
      %v402 = vunpack.c.l.b16 %v370
      %v403 = vunpack.c.l.b16 %v371
      %v404 = vunpack.c.l.b16 %v372
      %v405 = vunpack.c.l.b16 %v373
      %v406 = vunpack.c.l.b16 %v374
      %v407 = vunpack.c.l.b16 %v375
      %v408 = vunpack.c.l.b16 %v376
      %v409 = vunpack.c.l.b16 %v377
      %v410 = vunpack.c.l.b16 %v378
      %v411 = vunpack.c.l.b16 %v379
      %v412 = vpack.c.b16 %v397, %v396
      %v413 = vpack.c.b16 %v399, %v398
      %v414 = vpack.c.b16 %v401, %v400
      %v415 = vpack.c.b16 %v403, %v402
      %v416 = vpack.c.b16 %v405, %v404
      %v417 = vpack.c.b16 %v407, %v406
      %v418 = vpack.c.b16 %v409, %v408
      %v419 = vpack.c.b16 %v411, %v410
      %428 = vmatprep.subr.bf16.mxu0 0
      %429 = vmatpush1.bf16.msra.mxu0 %v419
      %430 = vmatprep.subr.bf16.mxu0 0
      %431 = vmatpush1.bf16.msra.mxu0 %v418
      %432 = vmatprep.subr.bf16.mxu0 0
      %433 = vmatpush1.bf16.msra.mxu0 %v417
      %434 = vmatprep.subr.bf16.mxu0 0
      %435 = vmatpush1.bf16.msra.mxu0 %v416
      %436 = vmatprep.subr.bf16.mxu0 0
      %437 = vmatpush1.bf16.msra.mxu0 %v415
      %438 = vmatprep.subr.bf16.mxu0 0
      %439 = vmatpush1.bf16.msra.mxu0 %v414
      %440 = vmatprep.subr.bf16.mxu0 0
      %441 = vmatpush1.bf16.msra.mxu0 %v413
      %442 = vmatprep.subr.bf16.mxu0 0
      %443 = vmatpush1.bf16.msra.mxu0 %v412
      %444 = vmatprep.subr.bf16.mxu0 0
      %445 = vmatpush2.bf16.msra.mxu0 0
      %446 = vmatprep.subr.bf16.mxu0 0
      %447 = vmatpush2.bf16.msra.mxu0 0
      %448 = vmatprep.subr.bf16.mxu0 0
      %449 = vmatpush2.bf16.msra.mxu0 0
      %450 = vmatprep.subr.bf16.mxu0 0
      %451 = vmatpush2.bf16.msra.mxu0 0
      %452 = vmatprep.subr.bf16.mxu0 0
      %453 = vmatpush2.bf16.msra.mxu0 0
      %454 = vmatprep.subr.bf16.mxu0 0
      %455 = vmatpush2.bf16.msra.mxu0 0
      %456 = vmatprep.subr.bf16.mxu0 0
      %457 = vmatpush2.bf16.msra.mxu0 0
      %458 = vmatprep.subr.bf16.mxu0 0
      %459 = vmatpush2.bf16.msra.mxu0 0
      %460 = vmatprep.mubr.bf16.mxu0 0
      %461 = vmatmul.mubr.bf16.gmra.mxu0 %v360
      %v462 = vpop.f32.mrf.mxu0
      %v463 = vadd.f32 0.0, %v462
      %v464 = vpop.f32.mrf.mxu0
      %v465 = vpop.f32.mrf.mxu0
      %v466 = vadd.f32 0.0, %v465
      %v467 = vpop.f32.mrf.mxu0
      %468 = vmatprep.mubr.bf16.mxu0 0
      %469 = vmatmul.mubr.bf16.gmra.mxu0 %v361
      %v470 = vpop.f32.mrf.mxu0
      %v471 = vadd.f32 0.0, %v470
      %v472 = vpop.f32.mrf.mxu0
      %v473 = vpop.f32.mrf.mxu0
      %v474 = vadd.f32 0.0, %v473
      %v475 = vpop.f32.mrf.mxu0
      %476 = vmatprep.mubr.bf16.mxu0 0
      %477 = vmatmul.mubr.bf16.gmra.mxu0 %v362
      %v478 = vpop.f32.mrf.mxu0
      %v479 = vadd.f32 0.0, %v478
      %v480 = vpop.f32.mrf.mxu0
      %v481 = vpop.f32.mrf.mxu0
      %v482 = vadd.f32 0.0, %v481
      %v483 = vpop.f32.mrf.mxu0
      %484 = vmatprep.mubr.bf16.mxu0 0
      %485 = vmatmul.mubr.bf16.gmra.mxu0 %v363
      %v486 = vpop.f32.mrf.mxu0
      %v487 = vadd.f32 0.0, %v486
      %v488 = vpop.f32.mrf.mxu0
      %v489 = vpop.f32.mrf.mxu0
      %v490 = vadd.f32 0.0, %v489
      %v491 = vpop.f32.mrf.mxu0
      %492 = vdwg.mxu0
      %v493 = vld [vmem:[#allocation2] sm:$0x1]
      %v494 = vadd.f32 %v463, %v466
      %v495 = vadd.f32 %v494, %v471
      %v496 = vadd.f32 %v495, %v474
      %v497 = vadd.f32 %v496, %v479
      %v498 = vadd.f32 %v497, %v482
      %v499 = vadd.f32 %v498, %v487
      %v500 = vadd.f32 %v499, %v490
      %v501 = vrot.slane %v500, 4
      %v502 = vadd.f32 %v500, %v501
      %v503 = vrot.slane %v502, 2
      %v504 = vadd.f32 %v502, %v503
      %v505 = vrot.slane %v504, 1
      %v506 = vadd.f32 %v504, %v505
      %v507 = vadd.f32 %v493, %v506
      %508 = vst [vmem:[#allocation2] sm:$0x1] %v507
      %v509 = vld [vmem:[#allocation3] sm:$0x1]
      %v510 = vmul.f32 %v463, %v463
      %v511 = vmul.f32 %v466, %v466
      %v512 = vmul.f32 %v471, %v471
      %v513 = vmul.f32 %v474, %v474
      %v514 = vmul.f32 %v479, %v479
      %v515 = vmul.f32 %v482, %v482
      %v516 = vmul.f32 %v487, %v487
      %v517 = vmul.f32 %v490, %v490
      %v518 = vadd.f32 %v510, %v511
      %v519 = vadd.f32 %v518, %v512
      %v520 = vadd.f32 %v519, %v513
      %v521 = vadd.f32 %v520, %v514
      %v522 = vadd.f32 %v521, %v515
      %v523 = vadd.f32 %v522, %v516
      %v524 = vadd.f32 %v523, %v517
      %v525 = vrot.slane %v524, 4
      %v526 = vadd.f32 %v524, %v525
      %v527 = vrot.slane %v526, 2
      %v528 = vadd.f32 %v526, %v527
      %v529 = vrot.slane %v528, 1
      %v530 = vadd.f32 %v528, %v529
      %v531 = vadd.f32 %v509, %v530
      %532 = vst [vmem:[#allocation3] sm:$0x1] %v531
      %s533 = smul.u32 %s19, 64
      %s534 = scalar_lea.vmem %s198, %s533
      %535 = vst [vmem:[%s534] sm:$0xff] %v463
      %536 = vst [vmem:[%s534 + $0x8] sm:$0xff] %v466
      %537 = vst [vmem:[%s534 + $0x10] sm:$0xff] %v471
      %538 = vst [vmem:[%s534 + $0x18] sm:$0xff] %v474
      %539 = vst [vmem:[%s534 + $0x20] sm:$0xff] %v479
      %540 = vst [vmem:[%s534 + $0x28] sm:$0xff] %v482
      %541 = vst [vmem:[%s534 + $0x30] sm:$0xff] %v487
      %542 = vst [vmem:[%s534 + $0x38] sm:$0xff] %v490
      // Predicated region
      $region37: #{deform_conv_downsample.1} parent=31 // pred_check
        %p543 = pneg %p200
      $region38: #{deform_conv_downsample.1} parent=31 // pred_check_branch
        %545 = sbr.rel (%p543) target = $region40
      $region39: #{deform_conv_downsample.1} parent=31 // pred_region
        %v546 = vld [vmem:[#allocation2] sm:$0x1]
        %v547 = vmul.f32 %v546, 0.015625
        %v548 = vld [vmem:[#allocation3] sm:$0x1]
        %v549 = vmul.f32 %v548, 0.015625
        %v550 = vmul.f32 %v547, %v547
        %v551 = vsub.f32 %v549, %v550
        %v552 = vmax.f32 %v551, 0.0
        %v553 = vadd.f32 %v552, 1e-05
        %v554 = vrsqrt.pop %v553
        %v555 = vld [vmem:[%s198] sm:$0xff]
        %v556 = vld [vmem:[%s198 + $0x8] sm:$0xff]
        %v557 = vld [vmem:[%s198 + $0x10] sm:$0xff]
        %v558 = vld [vmem:[%s198 + $0x18] sm:$0xff]
        %v559 = vld [vmem:[%s198 + $0x20] sm:$0xff]
        %v560 = vld [vmem:[%s198 + $0x28] sm:$0xff]
        %v561 = vld [vmem:[%s198 + $0x30] sm:$0xff]
        %v562 = vld [vmem:[%s198 + $0x38] sm:$0xff]
        %v564 = vlaneseq
        %v565 = vshrl.u32 %v564, 7
        %v566 = vsub.s32 0, %v565
        %v567 = vrot.slane %v547, %v566
        %v569 = vsub.f32 %v555, %v567
        %v570 = vsub.f32 %v556, %v567
        %v571 = vsub.f32 %v557, %v567
        %v572 = vsub.f32 %v558, %v567
        %v573 = vsub.f32 %v559, %v567
        %v574 = vsub.f32 %v560, %v567
        %v575 = vsub.f32 %v561, %v567
        %v576 = vsub.f32 %v562, %v567
        %v578 = vlaneseq
        %v579 = vshrl.u32 %v578, 7
        %v580 = vsub.s32 0, %v579
        %v581 = vrot.slane %v554, %v580
        %v583 = vmul.f32 %v569, %v581
        %v584 = vmul.f32 %v570, %v581
        %v585 = vmul.f32 %v571, %v581
        %v586 = vmul.f32 %v572, %v581
        %v587 = vmul.f32 %v573, %v581
        %v588 = vmul.f32 %v574, %v581
        %v589 = vmul.f32 %v575, %v581
        %v590 = vmul.f32 %v576, %v581
        %vm591 = vcmp.ge.f32.partialorder %v583, 0.0
        %vm592 = vcmp.ge.f32.partialorder %v584, 0.0
        %vm593 = vcmp.ge.f32.partialorder %v585, 0.0
        %vm594 = vcmp.ge.f32.partialorder %v586, 0.0
        %vm595 = vcmp.ge.f32.partialorder %v587, 0.0
        %vm596 = vcmp.ge.f32.partialorder %v588, 0.0
        %vm597 = vcmp.ge.f32.partialorder %v589, 0.0
        %vm598 = vcmp.ge.f32.partialorder %v590, 0.0
        %v599 = vmul.f32 %v583, 0.2
        %v600 = vmul.f32 %v584, 0.2
        %v601 = vmul.f32 %v585, 0.2
        %v602 = vmul.f32 %v586, 0.2
        %v603 = vmul.f32 %v587, 0.2
        %v604 = vmul.f32 %v588, 0.2
        %v605 = vmul.f32 %v589, 0.2
        %v606 = vmul.f32 %v590, 0.2
        %v607 = vsel %vm591, %v583, %v599
        %v608 = vsel %vm592, %v584, %v600
        %v609 = vsel %vm593, %v585, %v601
        %v610 = vsel %vm594, %v586, %v602
        %v611 = vsel %vm595, %v587, %v603
        %v612 = vsel %vm596, %v588, %v604
        %v613 = vsel %vm597, %v589, %v605
        %v614 = vsel %vm598, %v590, %v606
        %615 = vst [vmem:[%s198] sm:$0xff] %v607
        %616 = vst [vmem:[%s198 + $0x8] sm:$0xff] %v608
        %617 = vst [vmem:[%s198 + $0x10] sm:$0xff] %v609
        %618 = vst [vmem:[%s198 + $0x18] sm:$0xff] %v610
        %619 = vst [vmem:[%s198 + $0x20] sm:$0xff] %v611
        %620 = vst [vmem:[%s198 + $0x28] sm:$0xff] %v612
        %621 = vst [vmem:[%s198 + $0x30] sm:$0xff] %v613
        %622 = vst [vmem:[%s198 + $0x38] sm:$0xff] %v614
      $region40: #{deform_conv_downsample.1} parent=31 // pred_fallthru
        _
      %p623 = scmp.lt.s32.totalorder %s18, 1
      %s624 = scalar_select %p623, %s18, 1
      %s625 = smul.addr %s624, 8
      %s626 = smul.addr %s625, 8
      %s627 = scalar_lea.vmem %s3, %s626
      // Predicated region
      $region41: #{deform_conv_downsample.1} parent=31 // pred_check
        %p628 = pneg %p114
      $region42: #{deform_conv_downsample.1} parent=31 // pred_check_branch
        %630 = sbr.rel (%p628) target = $region44
      $region43: #{deform_conv_downsample.1} parent=31 // pred_region
        _
      $region44: #{deform_conv_downsample.1} parent=31 // pred_fallthru
        _
    $region32: #{deform_conv_downsample.1} parent=5 // pred_fallthru
      _
    %p631 = scmp.le.s32.totalorder 2, %s9
    // Predicated region
    $region45: #{deform_conv_downsample.1} parent=5 // pred_check
      %p632 = pneg %p631
    $region46: #{deform_conv_downsample.1} parent=5 // pred_check_branch
      %634 = sbr.rel (%p632) target = $region48
    $region47: #{deform_conv_downsample.1} parent=5 // pred_region
      %s635 = ssub.s32 %s9, 2
      // Predicated region
      $region49: #{deform_conv_downsample.1} parent=47 // pred_check
        %p636 = pneg %p120
      $region50: #{deform_conv_downsample.1} parent=47 // pred_check_branch
        %638 = sbr.rel (%p636) target = $region52
      $region51: #{deform_conv_downsample.1} parent=47 // pred_region
        %p639 = scmp.lt.s32.totalorder %s20, 1
        %s640 = scalar_select %p639, %s20, 1
        %s641 = smul.addr %s640, 8
        %s642 = smul.addr %s641, 8
        %s643 = scalar_lea.vmem %s3, %s642
      $region52: #{deform_conv_downsample.1} parent=47 // pred_fallthru
        _
    $region48: #{deform_conv_downsample.1} parent=5 // pred_fallthru
      _
  $region6: #{deform_conv_downsample.1} parent=0 // loop_footer
    %s13 = sadd.s32 1, %s9
  $region7: #{deform_conv_downsample.1} parent=0 // loop_footer_branch
    %8 = sbr.rel target = $region3
  $region8: #{deform_conv_downsample.1} parent=0 // loop_exit
    _

</llo_original>
